<compile_context>
chip_gen: v7x
topology: tpu7x:2x2x1
jax: 0.10.0
libtpu: 0.0.40
codegen_flags: <defaults>
</compile_context>

<pallas_src>
import functools

import jax
import jax.numpy as jnp
from jax import lax
from jax.experimental import pallas as pl
from jax.experimental.pallas import tpu as pltpu

# Network widths (match the PyTorch module).
H1 = 32   # fc[0] out
H2 = 16   # fc[2] out

# Row offsets of each parameter inside the packed slab.  Every region starts
# on a multiple of 8 so all in-kernel slices are sublane-tile friendly.
ROW_W1 = 0     # (state_space, H1)
ROW_B1 = 8     # (1, H1)
ROW_W2 = 16    # (H1, H2)
ROW_B2 = 48    # (1, H2)
ROW_WH = 56    # (H2, action_space + 1)  -- actor || critic fused weight
ROW_BH = 72    # (1, action_space + 1)   -- actor || critic fused bias
SLAB_ROWS = 80
SLAB_COLS = 128  # lane-dense


def _round_up(n, m):
    return ((n + m - 1) // m) * m


def _actor_critic_kernel(state_ref, slab_ref, out_ref, *,
                         state_space, action_space):
    x = state_ref[...]                                      # (TB, S)
    tb = x.shape[0]

    # ---- fc[0]: Linear(S, 32) as S broadcast FMAs on the VPU.
    # A K=2 MXU contraction is >98% padding and sits on the dependent
    # critical path; two FMAs in otherwise-idle VALU slots are cheaper. ----
    b1 = slab_ref[ROW_B1:ROW_B1 + 1, 0:H1]                  # (1, 32)
    h1 = jnp.broadcast_to(b1, (tb, H1))
    for k in range(state_space):                            # static unroll
        w1_row = slab_ref[ROW_W1 + k:ROW_W1 + k + 1, 0:H1]  # (1, 32)
        h1 = h1 + x[:, k:k + 1] * w1_row
    h1 = jnp.maximum(h1, 0.0)

    # ---- fc[2]: Linear(32, 16) -> ReLU (MXU). ----
    w2 = slab_ref[ROW_W2:ROW_W2 + H1, 0:H2]                 # (32, 16)
    b2 = slab_ref[ROW_B2:ROW_B2 + 1, 0:H2]                  # (1, 16)
    h2 = jnp.maximum(
        jnp.dot(h1, w2, preferred_element_type=jnp.float32) + b2, 0.0)

    # ---- Fused actor||critic head at full 128-lane width.
    # Columns >= action_space+1 of wh/bh are zero in the slab, so the result
    # is already a lane-dense (TB, 128) slab with zeros in the padding. ----
    wh = slab_ref[ROW_WH:ROW_WH + H2, :]                    # (16, 128)
    bh = slab_ref[ROW_BH:ROW_BH + 1, :]                     # (1, 128)
    head = jnp.dot(h2, wh, preferred_element_type=jnp.float32) + bh  # (TB,128)

    col = lax.broadcasted_iota(jnp.int32, head.shape, 1)
    is_action = col < action_space
    is_value = col == action_space

    # Numerically-stable softmax over the action columns only.
    logits = jnp.where(is_action, head, -1e30)
    m = jnp.max(logits, axis=-1, keepdims=True)
    e = jnp.exp(logits - m)                                 # masked cols -> 0
    denom = jnp.sum(e, axis=-1, keepdims=True)
    r = pl.reciprocal(denom, approx=True)                   # EUP slot
    r = r * (2.0 - denom * r)                               # one N-R step
    probs = e * r                                           # (TB, 128)

    # Single unmasked, lane-dense store:
    #   cols [0, A) = probs, col A = value, cols > A = 0.
    out_ref[...] = jnp.where(is_value, head, probs)


def pack_params(params, *, state_space=2, action_space=4):
    """Pack all weights/biases into one lane-dense (80, 128) f32 slab.

    Done once at init time; the kernel then needs a single resident
    parameter block.  Columns past action_space+1 of the head rows stay zero
    so the full-width head matmul is correct.
    """
    assert state_space <= ROW_B1 - ROW_W1, "state_space exceeds slab layout"
    assert action_space + 1 <= SLAB_COLS, "action_space exceeds slab layout"
    assert H1 <= SLAB_COLS and H2 <= SLAB_COLS

    wh = jnp.concatenate([params["wa"], params["wc"]], axis=1)  # (H2, A+1)
    bh = jnp.concatenate([params["ba"], params["bc"]], axis=1)  # (1, A+1)

    slab = jnp.zeros((SLAB_ROWS, SLAB_COLS), jnp.float32)
    slab = slab.at[ROW_W1:ROW_W1 + state_space, 0:H1].set(params["w1"])
    slab = slab.at[ROW_B1:ROW_B1 + 1, 0:H1].set(params["b1"])
    slab = slab.at[ROW_W2:ROW_W2 + H1, 0:H2].set(params["w2"])
    slab = slab.at[ROW_B2:ROW_B2 + 1, 0:H2].set(params["b2"])
    slab = slab.at[ROW_WH:ROW_WH + H2, 0:wh.shape[1]].set(wh)
    slab = slab.at[ROW_BH:ROW_BH + 1, 0:bh.shape[1]].set(bh)
    return slab


def actor_critic_forward(state, slab, *, state_space=2, action_space=4,
                         block_batch=256):
    """Batched forward pass.

    grid=(ceil(B/TB),): state/output tiled over the batch, parameter slab
    resident (constant index_map).  TB defaults to 256 (one MXU M-pass on
    v6e/v7x, two 128-passes on v5e); small batches shrink TB to a multiple
    of 8.  Batch is zero-padded to a tile multiple and sliced back after.
    """
    batch = state.shape[0]
    tb = min(block_batch, _round_up(batch, 8))
    tb = _round_up(tb, 8)
    padded = _round_up(batch, tb)
    if padded != batch:
        state = jnp.pad(state, ((0, padded - batch), (0, 0)))
    grid = (padded // tb,)

    out = pl.pallas_call(
        functools.partial(_actor_critic_kernel,
                          state_space=state_space, action_space=action_space),
        out_shape=jax.ShapeDtypeStruct((padded, SLAB_COLS), jnp.float32),
        grid=grid,
        in_specs=[
            pl.BlockSpec((tb, state_space), lambda i: (i, 0)),
            pl.BlockSpec((SLAB_ROWS, SLAB_COLS), lambda i: (0, 0)),  # resident
        ],
        out_specs=pl.BlockSpec((tb, SLAB_COLS), lambda i: (i, 0)),
        compiler_params=pltpu.CompilerParams(
            dimension_semantics=("parallel",)),   # dual-TC on v7x
    )(state, slab)

    # Wrapper-side slicing of the lane-dense output slab (free layout work).
    probs = out[:batch, :action_space]
    value = out[:batch, action_space:action_space + 1]
    return probs, value


def init_params(key, state_space=2, action_space=4):
    """nn.Linear-style init: U(-1/sqrt(fan_in), +1/sqrt(fan_in))."""
    def linear(key, fan_in, fan_out):
        kw, kb = jax.random.split(key)
        bound = 1.0 / jnp.sqrt(fan_in)
        w = jax.random.uniform(kw, (fan_in, fan_out), jnp.float32, -bound, bound)
        b = jax.random.uniform(kb, (1, fan_out), jnp.float32, -bound, bound)
        return w, b

    k1, k2, k3, k4 = jax.random.split(key, 4)
    w1, b1 = linear(k1, state_space, H1)
    w2, b2 = linear(k2, H1, H2)
    wa, ba = linear(k3, H2, action_space)
    wc, bc = linear(k4, H2, 1)
    return {"w1": w1, "b1": b1, "w2": w2, "b2": b2,
            "wa": wa, "ba": ba, "wc": wc, "bc": bc}


def reference_forward(state, p):
    h1 = jnp.maximum(state @ p["w1"] + p["b1"], 0.0)
    h2 = jnp.maximum(h1 @ p["w2"] + p["b2"], 0.0)
    logits = h2 @ p["wa"] + p["ba"]
    probs = jax.nn.softmax(logits, axis=-1)
    value = h2 @ p["wc"] + p["bc"]
    return probs, value


if __name__ == "__main__":
    key = jax.random.PRNGKey(0)
    k_param, k_state = jax.random.split(key)

    state_space, action_space, batch = 2, 4, 13   # non-multiple exercises padding
    params = init_params(k_param, state_space, action_space)
    slab = pack_params(params, state_space=state_space, action_space=action_space)
    state = jax.random.normal(k_state, (batch, state_space), jnp.float32)

    # block_batch=8 -> 2-tile grid at this small batch (exercises pipelining /
    # resident-slab path); real rollouts would use the default TB=256.
    probs, value = actor_critic_forward(state, slab,
                                        state_space=state_space,
                                        action_space=action_space,
                                        block_batch=8)
    jax.block_until_ready((probs, value))

    # sanity check against pure-JAX reference
    ref_probs, ref_value = reference_forward(state, params)
    assert probs.shape == (batch, action_space)
    assert value.shape == (batch, 1)
    assert jnp.allclose(probs, ref_probs, atol=1e-5, rtol=1e-5)
    assert jnp.allclose(value, ref_value, atol=1e-5, rtol=1e-5)
    assert jnp.allclose(jnp.sum(probs, axis=-1), 1.0, atol=1e-5)

    print("KERNEL_OK")
</pallas_src>

<mosaic_0001>
module attributes {stable_mosaic.version = 11 : i64} {
  func.func @_actor_critic_kernel(%arg0: i32, %arg1: memref<8x2xf32, #tpu.memory_space<vmem>>, %arg2: memref<80x128xf32, #tpu.memory_space<vmem>>, %arg3: memref<8x128xf32, #tpu.memory_space<vmem>>) attributes {dimension_semantics = [#tpu.dimension_semantics<parallel>], iteration_bounds = array<i64: 2>, scalar_prefetch = 0 : i64, scratch_operands = 0 : i64, tpu.core_type = #tpu.core_type<tc>, window_params = [{transform_indices = @transform_0, window_bounds = array<i64: 8, 2>}, {pipeline_mode = #tpu.pipeline_mode<synchronous>, transform_indices = @transform_1, window_bounds = array<i64: 80, 128>}, {transform_indices = @transform_2, window_bounds = array<i64: 8, 128>}]} {
    %c0 = arith.constant 0 : index
    %c0_0 = arith.constant 0 : index
    %0 = vector.load %arg1[%c0, %c0_0] : memref<8x2xf32, #tpu.memory_space<vmem>>, vector<8x2xf32>
    %c8 = arith.constant 8 : index
    %c0_1 = arith.constant 0 : index
    %1 = vector.load %arg2[%c8, %c0_1] : memref<80x128xf32, #tpu.memory_space<vmem>>, vector<1x32xf32>
    %2 = vector.shape_cast %1 : vector<1x32xf32> to vector<1x32xf32>
    %3 = vector.broadcast %2 : vector<1x32xf32> to vector<8x32xf32>
    %c0_2 = arith.constant 0 : index
    %c0_3 = arith.constant 0 : index
    %4 = vector.load %arg2[%c0_2, %c0_3] : memref<80x128xf32, #tpu.memory_space<vmem>>, vector<1x32xf32>
    %5 = vector.extract_strided_slice %0 {offsets = [0, 0], sizes = [8, 1], strides = [1, 1]} : vector<8x2xf32> to vector<8x1xf32>
    %6 = vector.broadcast %5 : vector<8x1xf32> to vector<8x32xf32>
    %7 = vector.broadcast %4 : vector<1x32xf32> to vector<8x32xf32>
    %8 = arith.mulf %6, %7 : vector<8x32xf32>
    %9 = arith.addf %3, %8 : vector<8x32xf32>
    %c1 = arith.constant 1 : index
    %c0_4 = arith.constant 0 : index
    %10 = vector.load %arg2[%c1, %c0_4] : memref<80x128xf32, #tpu.memory_space<vmem>>, vector<1x32xf32>
    %11 = vector.extract_strided_slice %0 {offsets = [0, 1], sizes = [8, 1], strides = [1, 1]} : vector<8x2xf32> to vector<8x1xf32>
    %12 = vector.broadcast %11 : vector<8x1xf32> to vector<8x32xf32>
    %13 = vector.broadcast %10 : vector<1x32xf32> to vector<8x32xf32>
    %14 = arith.mulf %12, %13 : vector<8x32xf32>
    %15 = arith.addf %9, %14 : vector<8x32xf32>
    %cst = arith.constant 0.000000e+00 : f32
    %16 = vector.broadcast %cst : f32 to vector<8x32xf32>
    %17 = arith.maximumf %15, %16 : vector<8x32xf32>
    %c16 = arith.constant 16 : index
    %c0_5 = arith.constant 0 : index
    %18 = vector.load %arg2[%c16, %c0_5] : memref<80x128xf32, #tpu.memory_space<vmem>>, vector<32x16xf32>
    %c48 = arith.constant 48 : index
    %c0_6 = arith.constant 0 : index
    %19 = vector.load %arg2[%c48, %c0_6] : memref<80x128xf32, #tpu.memory_space<vmem>>, vector<1x16xf32>
    %cst_7 = arith.constant dense<0.000000e+00> : vector<8x16xf32>
    %20 = tpu.matmul %17, %18, %cst_7 {dimension_numbers = #tpu.dot_dimension_numbers<[1], [0], [0], [1], [0, 0, 1, 1], [], []>} : vector<8x32xf32>, vector<32x16xf32>, vector<8x16xf32> -> vector<8x16xf32>
    %21 = vector.broadcast %19 : vector<1x16xf32> to vector<8x16xf32>
    %22 = arith.addf %20, %21 : vector<8x16xf32>
    %cst_8 = arith.constant 0.000000e+00 : f32
    %23 = vector.broadcast %cst_8 : f32 to vector<8x16xf32>
    %24 = arith.maximumf %22, %23 : vector<8x16xf32>
    %c56 = arith.constant 56 : index
    %c0_9 = arith.constant 0 : index
    %25 = vector.load %arg2[%c56, %c0_9] : memref<80x128xf32, #tpu.memory_space<vmem>>, vector<16x128xf32>
    %c72 = arith.constant 72 : index
    %c0_10 = arith.constant 0 : index
    %26 = vector.load %arg2[%c72, %c0_10] : memref<80x128xf32, #tpu.memory_space<vmem>>, vector<1x128xf32>
    %cst_11 = arith.constant dense<0.000000e+00> : vector<8x128xf32>
    %27 = tpu.matmul %24, %25, %cst_11 {dimension_numbers = #tpu.dot_dimension_numbers<[1], [0], [0], [1], [0, 0, 1, 1], [], []>} : vector<8x16xf32>, vector<16x128xf32>, vector<8x128xf32> -> vector<8x128xf32>
    %28 = vector.broadcast %26 : vector<1x128xf32> to vector<8x128xf32>
    %29 = arith.addf %27, %28 : vector<8x128xf32>
    %30 = tpu.iota {dimensions = array<i32: 1>} : vector<8x128xi32>
    %c4_i32 = arith.constant 4 : i32
    %31 = vector.broadcast %c4_i32 : i32 to vector<8x128xi32>
    %32 = arith.cmpi slt, %30, %31 : vector<8x128xi32>
    %c4_i32_12 = arith.constant 4 : i32
    %33 = vector.broadcast %c4_i32_12 : i32 to vector<8x128xi32>
    %34 = arith.cmpi eq, %30, %33 : vector<8x128xi32>
    %cst_13 = arith.constant -1.000000e+30 : f32
    %35 = vector.broadcast %cst_13 : f32 to vector<8x128xf32>
    %36 = arith.select %32, %29, %35 : vector<8x128xi1>, vector<8x128xf32>
    %cst_14 = arith.constant dense<0xFF800000> : vector<8xf32>
    %37 = vector.multi_reduction <maximumf>, %36, %cst_14 [1] : vector<8x128xf32> to vector<8xf32>
    %38 = vector.shape_cast %37 : vector<8xf32> to vector<8x1xf32>
    %39 = vector.broadcast %38 : vector<8x1xf32> to vector<8x128xf32>
    %40 = arith.subf %36, %39 : vector<8x128xf32>
    %41 = math.exp %40 : vector<8x128xf32>
    %cst_15 = arith.constant dense<0.000000e+00> : vector<8xf32>
    %42 = vector.multi_reduction <add>, %41, %cst_15 [1] : vector<8x128xf32> to vector<8xf32>
    %43 = vector.shape_cast %42 : vector<8xf32> to vector<8x1xf32>
    %44 = tpu.reciprocal %43 {approx = true} : vector<8x1xf32> -> vector<8x1xf32>
    %45 = arith.mulf %43, %44 : vector<8x1xf32>
    %cst_16 = arith.constant 2.000000e+00 : f32
    %46 = vector.broadcast %cst_16 : f32 to vector<8x1xf32>
    %47 = arith.subf %46, %45 : vector<8x1xf32>
    %48 = arith.mulf %44, %47 : vector<8x1xf32>
    %49 = vector.broadcast %48 : vector<8x1xf32> to vector<8x128xf32>
    %50 = arith.mulf %41, %49 : vector<8x128xf32>
    %51 = arith.select %34, %29, %50 : vector<8x128xi1>, vector<8x128xf32>
    %c0_17 = arith.constant 0 : index
    %c0_18 = arith.constant 0 : index
    %52 = vector.load %arg3[%c0_17, %c0_18] : memref<8x128xf32, #tpu.memory_space<vmem>>, vector<8x128xf32>
    tpu.vector_store %arg3[%c0_17, %c0_18], %51 {strides = array<i32>} : memref<8x128xf32, #tpu.memory_space<vmem>>, vector<8x128xf32>,
    return
  }
  func.func @transform_0(%arg0: i32) -> (i32, i32) {
    %c0_i32 = arith.constant 0 : i32
    %c0_i32_0 = arith.constant 0 : i32
    return %arg0, %c0_i32 : i32, i32
  }
  func.func @transform_1(%arg0: i32) -> (i32, i32) {
    %c0_i32 = arith.constant 0 : i32
    %c0_i32_0 = arith.constant 0 : i32
    %c0_i32_1 = arith.constant 0 : i32
    return %c0_i32, %c0_i32_0 : i32, i32
  }
  func.func @transform_2(%arg0: i32) -> (i32, i32) {
    %c0_i32 = arith.constant 0 : i32
    %c0_i32_0 = arith.constant 0 : i32
    return %arg0, %c0_i32 : i32, i32
  }
}

</mosaic_0001>

<llo_original>
// kernel: tpu_custom_call.1
$region0: #{tpu_custom_call.1}
  #allocation0 [shape = 'u32[]', space=smem, size = 0x4, offset = 0x4, fixed_abs, tag = 'smem constant byte address 0x4 - core index']
  #allocation1 [shape = 'u32[144,128]{1,0:T(1,128)}', space=vmem, size = 0x12000, scoped, tag = 'internal scratch']
  %s0 = inlined_call_operand.vmem [shape: f32[16,2], index: 0, kind: input, shape index: {}]
  %s1 = inlined_call_operand.hbm [shape: f32[80,128], index: 1, kind: input, shape index: {}]
  %s2 = inlined_call_operand.hbm [shape: f32[16,128], index: 2, kind: output, shape index: {}]
  %s3 = sld [smem:[#allocation0]]
  $region45: #{tpu_custom_call.1} parent=0
    _
  %s5 = ssub.s32 1, %s3
  %s6 = scalar_select 0, %s5, %s3
  $region1: #{tpu_custom_call.1} parent=0
    #allocation2 [shape = 'u8[40960]{0}', space=vmem, size = 0xa000, scoped, tag = 'input window, operand 1, single buffered']
    #allocation3 [shape = 's32[2]{0}', space=sflag, size = 0x8, scoped, tag = 'scoped memory for tpu_custom_call.1']
    #allocation4 [shape = 's32[2]{0}', space=sflag, size = 0x8, scoped, tag = 'scoped memory for tpu_custom_call.1']
    #allocation5 [shape = 'u8[8192]{0}', space=vmem, size = 0x2000, scoped, tag = 'output window, operand 0']
    %7 = vsyncpa [#allocation3], 0
    %8 = vsyncpa [#allocation4], 0
    %s9 = scalar_lea.sflag [#allocation4], 1
    %10 = vsyncpa %s9, 0
    loop: start=0, step=1, limit=4
    $region2: #{tpu_custom_call.1} parent=1 // loop_pre_header
      _
    $region3: #{tpu_custom_call.1} parent=1 // loop_header
      %s12 = sphi 0, %s16
      %p13 = scmp.ge.s32.totalorder %s12, 4
      %s22 = sphi 0, %s24
      %s25 = sphi 0, %s22
      %s26 = sphi 0, %s25
      %s42 = sphi 0, %s26
      %s46 = sphi 0, %s46
      %s48 = sphi 0, %s46
      %s49 = sphi 0, %s48
      %s63 = sphi 0, %s49
      %s69 = sphi 0, %s71
      %s72 = sphi 0, %s69
      %s73 = sphi 0, %s72
      %s89 = sphi 0, %s73
    $region4: #{tpu_custom_call.1} parent=1 // loop_header_branch
      %15 = sbr.rel (%p13) target = $region8
    $region5: #{tpu_custom_call.1} parent=1 // loop_body
      %s17 = ssub.s32 %s12, 1
      %s18 = ssub.s32 %s12, 2
      %s19 = sadd.s32 %s12, 1
      %s20 = ssub.s32 %s12, %s19
      %p21 = scmp.eq.s32.totalorder %s20, 0
      %s23 = sadd.s32 %s22, 1
      %s24 = scalar_select %p21, %s22, %s23
      %p27 = pneg %p21
      %p28 = scmp.eq.s32.totalorder %s12, 1
      %p29 = por %p27, %p28
      %p30 = scmp.ne.s32.totalorder %s22, %s25
      %p31 = scmp.eq.s32.totalorder %s12, 0
      %p32 = por %p30, %p31
      %p33 = scmp.ne.s32.totalorder %s22, %s25
      %p34 = scmp.eq.s32.totalorder %s17, 1
      %p35 = por %p33, %p34
      %p36 = scmp.ne.s32.totalorder %s25, %s26
      %p37 = scmp.eq.s32.totalorder %s17, 0
      %p38 = por %p36, %p37
      %p39 = scmp.ne.s32.totalorder %s25, %s26
      %p40 = scmp.eq.s32.totalorder %s18, 1
      %p41 = por %p39, %p40
      %p43 = scmp.ne.s32.totalorder %s26, %s42
      %p44 = scmp.eq.s32.totalorder %s18, 0
      %p45 = por %p43, %p44
      %s47 = sadd.s32 %s46, 1
      %p50 = scmp.eq.s32.totalorder %s12, 1
      %p51 = scmp.ne.s32.totalorder %s46, %s48
      %p52 = scmp.eq.s32.totalorder %s12, 0
      %p53 = por %p51, %p52
      %p54 = scmp.ne.s32.totalorder %s46, %s48
      %p55 = scmp.eq.s32.totalorder %s17, 1
      %p56 = por %p54, %p55
      %p57 = scmp.ne.s32.totalorder %s48, %s49
      %p58 = scmp.eq.s32.totalorder %s17, 0
      %p59 = por %p57, %p58
      %p60 = scmp.ne.s32.totalorder %s48, %s49
      %p61 = scmp.eq.s32.totalorder %s18, 1
      %p62 = por %p60, %p61
      %p64 = scmp.ne.s32.totalorder %s49, %s63
      %p65 = scmp.eq.s32.totalorder %s18, 0
      %p66 = por %p64, %p65
      %s67 = ssub.s32 %s12, %s19
      %p68 = scmp.eq.s32.totalorder %s67, 0
      %s70 = sadd.s32 %s69, 1
      %s71 = scalar_select %p68, %s69, %s70
      %p74 = pneg %p68
      %p75 = scmp.eq.s32.totalorder %s12, 1
      %p76 = por %p74, %p75
      %p77 = scmp.ne.s32.totalorder %s69, %s72
      %p78 = scmp.eq.s32.totalorder %s12, 0
      %p79 = por %p77, %p78
      %p80 = scmp.ne.s32.totalorder %s69, %s72
      %p81 = scmp.eq.s32.totalorder %s17, 1
      %p82 = por %p80, %p81
      %p83 = scmp.ne.s32.totalorder %s72, %s73
      %p84 = scmp.eq.s32.totalorder %s17, 0
      %p85 = por %p83, %p84
      %p86 = scmp.ne.s32.totalorder %s72, %s73
      %p87 = scmp.eq.s32.totalorder %s18, 1
      %p88 = por %p86, %p87
      %p90 = scmp.ne.s32.totalorder %s73, %s89
      %p91 = scmp.eq.s32.totalorder %s18, 0
      %p92 = por %p90, %p91
      %p93 = scmp.le.s32.totalorder 1, %s12
      %p94 = scmp.lt.s32.totalorder %s12, 3
      %p95 = pnand %p93, %p94
      %p96 = pneg %p95
      // Predicated region
      $region9: #{tpu_custom_call.1} parent=5 // pred_check
        _
      $region10: #{tpu_custom_call.1} parent=5 // pred_check_branch
        %98 = sbr.rel (%p95) target = $region12
      $region11: #{tpu_custom_call.1} parent=5 // pred_region
        %s99 = ssub.s32 %s12, 1
        // Predicated region
        $region13: #{tpu_custom_call.1} parent=11 // pred_check
          %p100 = pneg %p59
        $region14: #{tpu_custom_call.1} parent=11 // pred_check_branch
          %102 = sbr.rel (%p100) target = $region16
        $region15: #{tpu_custom_call.1} parent=11 // pred_region
          %s104 = ssub.s32 1280, 1280
          %105 = vsyncadd [#allocation3], %s104
          %s106 = sshll.u32 [#allocation2], 4
          %s107 = int_to_ptr.vmem [resolvable:$true] %s106
          %112 = dma.hbm_to_vmem [thread:$0]  %s1, 1280, %s107, [#allocation3], 128, 128, 8
        $region16: #{tpu_custom_call.1} parent=11 // pred_fallthru
          _
      $region12: #{tpu_custom_call.1} parent=5 // pred_fallthru
        _
      %p113 = scmp.lt.s32.totalorder %s12, 2
      // Predicated region
      $region17: #{tpu_custom_call.1} parent=5 // pred_check
        %p114 = pneg %p113
      $region18: #{tpu_custom_call.1} parent=5 // pred_check_branch
        %116 = sbr.rel (%p114) target = $region20
      $region19: #{tpu_custom_call.1} parent=5 // pred_region
        // Predicated region
        $region21: #{tpu_custom_call.1} parent=19 // pred_check
          %p117 = pneg %p32
        $region22: #{tpu_custom_call.1} parent=19 // pred_check_branch
          %119 = sbr.rel (%p117) target = $region24
        $region23: #{tpu_custom_call.1} parent=19 // pred_region
          %p120 = scmp.lt.s32.totalorder %s12, 1
          %s121 = scalar_select %p120, %s12, 1
          %s122 = smul.addr %s121, 8
          %s123 = scalar_lea.vmem %s0, %s122
        $region24: #{tpu_custom_call.1} parent=19 // pred_fallthru
          _
      $region20: #{tpu_custom_call.1} parent=5 // pred_fallthru
        _
      %p124 = scmp.le.s32.totalorder 1, %s12
      %p125 = scmp.lt.s32.totalorder %s12, 3
      %p126 = pnand %p124, %p125
      %p127 = pneg %p126
      // Predicated region
      $region25: #{tpu_custom_call.1} parent=5 // pred_check
        _
      $region26: #{tpu_custom_call.1} parent=5 // pred_check_branch
        %129 = sbr.rel (%p126) target = $region28
      $region27: #{tpu_custom_call.1} parent=5 // pred_region
        %s130 = ssub.s32 %s12, 1
        // Predicated region
        $region29: #{tpu_custom_call.1} parent=27 // pred_check
          %p131 = pneg %p59
        $region30: #{tpu_custom_call.1} parent=27 // pred_check_branch
          %133 = sbr.rel (%p131) target = $region32
        $region31: #{tpu_custom_call.1} parent=27 // pred_region
          %134 = dma.done [#allocation3], 1280
        $region32: #{tpu_custom_call.1} parent=27 // pred_fallthru
          _
        %p135 = scmp.lt.s32.totalorder %s17, 1
        %s136 = scalar_select %p135, %s17, 1
        %s137 = smul.addr %s136, 8
        %s138 = scalar_lea.vmem %s0, %s137
        %p139 = pneg %p38
        %p140 = pneg %p35
        %p141 = pneg %p59
        %p142 = pneg %p56
        %p143 = pneg %p85
        %p144 = pneg %p82
        %s145 = sand.u32 %s72, 1
        %s146 = scalar_lea.sflag [#allocation4], %s145
        %s147 = sand.u32 %s72, 1
        %s148 = smul.addr %s147, 8
        %s149 = scalar_lea.vmem [#allocation5], %s148
        %p150 = scmp.lt.s32.totalorder %s17, 1
        %s151 = scalar_select %p150, %s17, 1
        %s152 = smul.addr %s151, 8
        %s153 = scalar_lea.vmem %s0, %s152
        %v154 = vld [vmem:[%s153] sm:$0xff]
        %v155 = vld [vmem:[#allocation2 + $0x8] sm:$0x1]
        %v156 = vlaneseq
        %v157 = vshrl.u32 %v156, 7
        %v158 = vsub.s32 0, %v157
        %v159 = vrot.slane %v155, %v158
        %v160 = vld [vmem:[#allocation2] sm:$0x1]
        %162 = vset.pattern.permute.xlu0 0
        %163 = vperm.xlu0 %162, %v154
        %v164 = vpop.permute.xlu0 %163
        %v166 = vlaneseq
        %v167 = vshrl.u32 %v166, 7
        %v168 = vsub.s32 0, %v167
        %v169 = vrot.slane %v160, %v168
        %v170 = vmul.f32 %v164, %v169
        %v171 = vadd.f32 %v159, %v170
        %v172 = vld [vmem:[#allocation2 + $0x1] sm:$0x1]
        %173 = vset.pattern.permute.xlu0 1
        %174 = vperm.xlu0 %173, %v154
        %v175 = vpop.permute.xlu0 %174
        %v177 = vlaneseq
        %v178 = vshrl.u32 %v177, 7
        %v179 = vsub.s32 0, %v178
        %v180 = vrot.slane %v172, %v179
        %v181 = vmul.f32 %v175, %v180
        %v182 = vadd.f32 %v171, %v181
        %v183 = vmax.f32 %v182, 0.0
        %v184 = vld [vmem:[#allocation2 + $0x10] sm:$0xff]
        %v185 = vld [vmem:[#allocation2 + $0x18] sm:$0xff]
        %v186 = vld [vmem:[#allocation2 + $0x20] sm:$0xff]
        %v187 = vld [vmem:[#allocation2 + $0x28] sm:$0xff]
        %v188 = vld [vmem:[#allocation2 + $0x30] sm:$0x1]
        %v189 = vlaneseq
        %v190 = vshrl.u32 %v189, 7
        %v191 = vsub.s32 0, %v190
        %v192 = vrot.slane %v188, %v191
        %vm193 = vcmask 261120
        %v195 = vsel %vm193, %v183, 0
        %197 = vmatprep.subr.mxu0 0.0
        %198 = vmatpush1.msra.mxu0 %v184
        %199 = vmatprep.subr.mxu0 0.0
        %200 = vmatpush1.msra.mxu0 %v185
        %201 = vmatprep.subr.mxu0 0.0
        %202 = vmatpush1.msra.mxu0 %v186
        %203 = vmatprep.subr.mxu0 0.0
        %204 = vmatpush1.msra.mxu0 %v187
        %205 = vmatprep.subr.mxu0 0.0
        %206 = vmatpush1.msra.mxu0 0.0
        %207 = vmatprep.subr.mxu0 0.0
        %208 = vmatpush1.msra.mxu0 0.0
        %209 = vmatprep.subr.mxu0 0.0
        %210 = vmatpush1.msra.mxu0 0.0
        %211 = vmatprep.subr.mxu0 0.0
        %212 = vmatpush1.msra.mxu0 0.0
        %213 = vmatprep.subr.mxu0 0.0
        %214 = vmatpush1.msra.mxu0 0.0
        %215 = vmatprep.subr.mxu0 0.0
        %216 = vmatpush1.msra.mxu0 0.0
        %217 = vmatprep.subr.mxu0 0.0
        %218 = vmatpush1.msra.mxu0 0.0
        %219 = vmatprep.subr.mxu0 0.0
        %220 = vmatpush1.msra.mxu0 0.0
        %221 = vmatprep.subr.mxu0 0.0
        %222 = vmatpush1.msra.mxu0 0.0
        %223 = vmatprep.subr.mxu0 0.0
        %224 = vmatpush1.msra.mxu0 0.0
        %225 = vmatprep.subr.mxu0 0.0
        %226 = vmatpush1.msra.mxu0 0.0
        %227 = vmatprep.subr.mxu0 0.0
        %228 = vmatpush1.msra.mxu0 0.0
        %229 = vmatprep.subr.mxu0 0.0
        %230 = vmatpush1.msra.mxu0 0.0
        %231 = vmatprep.subr.mxu0 0.0
        %232 = vmatpush1.msra.mxu0 0.0
        %233 = vmatprep.subr.mxu0 0.0
        %234 = vmatpush1.msra.mxu0 0.0
        %235 = vmatprep.subr.mxu0 0.0
        %236 = vmatpush1.msra.mxu0 0.0
        %237 = vmatprep.subr.mxu0 0.0
        %238 = vmatpush1.msra.mxu0 0.0
        %239 = vmatprep.subr.mxu0 0.0
        %240 = vmatpush1.msra.mxu0 0.0
        %241 = vmatprep.subr.mxu0 0.0
        %242 = vmatpush1.msra.mxu0 0.0
        %243 = vmatprep.subr.mxu0 0.0
        %244 = vmatpush1.msra.mxu0 0.0
        %245 = vmatprep.subr.mxu0 0.0
        %246 = vmatpush1.msra.mxu0 0.0
        %247 = vmatprep.subr.mxu0 0.0
        %248 = vmatpush1.msra.mxu0 0.0
        %249 = vmatprep.subr.mxu0 0.0
        %250 = vmatpush1.msra.mxu0 0.0
        %251 = vmatprep.subr.mxu0 0.0
        %252 = vmatpush1.msra.mxu0 0.0
        %253 = vmatprep.subr.mxu0 0.0
        %254 = vmatpush1.msra.mxu0 0.0
        %255 = vmatprep.subr.mxu0 0.0
        %256 = vmatpush1.msra.mxu0 0.0
        %257 = vmatprep.subr.mxu0 0.0
        %258 = vmatpush1.msra.mxu0 0.0
        %259 = vmatprep.subr.mxu0 0.0
        %260 = vmatpush1.msra.mxu0 0.0
        %261 = vmatprep.mubr.f32.mxu0 0.0
        %262 = vmatmul.mubr.f32.gmra.mrb[0].mxu0 %v195
        %v263 = vpop.f32.mrb[0].mxu0
        %v264 = vadd.f32 %v192, %v263
        %v265 = vpop.f32.mrb[0].mxu0
        %266 = vdwg.mxu0
        %v267 = vmax.f32 %v264, 0.0
        %v268 = vld [vmem:[#allocation2 + $0x38] sm:$0xff]
        %v269 = vld [vmem:[#allocation2 + $0x40] sm:$0xff]
        %v270 = vld [vmem:[#allocation2 + $0x48] sm:$0x1]
        %v271 = vlaneseq
        %v272 = vshrl.u32 %v271, 7
        %v273 = vsub.s32 0, %v272
        %v274 = vrot.slane %v270, %v273
        %vm275 = vcmask 130048
        %v277 = vsel %vm275, %v267, 0
        %279 = vmatprep.subr.mxu0 0.0
        %280 = vmatpush1.msra.mxu0 %v268
        %281 = vmatprep.subr.mxu0 0.0
        %282 = vmatpush1.msra.mxu0 %v269
        %283 = vmatprep.subr.mxu0 0.0
        %284 = vmatpush1.msra.mxu0 0.0
        %285 = vmatprep.subr.mxu0 0.0
        %286 = vmatpush1.msra.mxu0 0.0
        %287 = vmatprep.subr.mxu0 0.0
        %288 = vmatpush1.msra.mxu0 0.0
        %289 = vmatprep.subr.mxu0 0.0
        %290 = vmatpush1.msra.mxu0 0.0
        %291 = vmatprep.subr.mxu0 0.0
        %292 = vmatpush1.msra.mxu0 0.0
        %293 = vmatprep.subr.mxu0 0.0
        %294 = vmatpush1.msra.mxu0 0.0
        %295 = vmatprep.subr.mxu0 0.0
        %296 = vmatpush1.msra.mxu0 0.0
        %297 = vmatprep.subr.mxu0 0.0
        %298 = vmatpush1.msra.mxu0 0.0
        %299 = vmatprep.subr.mxu0 0.0
        %300 = vmatpush1.msra.mxu0 0.0
        %301 = vmatprep.subr.mxu0 0.0
        %302 = vmatpush1.msra.mxu0 0.0
        %303 = vmatprep.subr.mxu0 0.0
        %304 = vmatpush1.msra.mxu0 0.0
        %305 = vmatprep.subr.mxu0 0.0
        %306 = vmatpush1.msra.mxu0 0.0
        %307 = vmatprep.subr.mxu0 0.0
        %308 = vmatpush1.msra.mxu0 0.0
        %309 = vmatprep.subr.mxu0 0.0
        %310 = vmatpush1.msra.mxu0 0.0
        %311 = vmatprep.subr.mxu0 0.0
        %312 = vmatpush1.msra.mxu0 0.0
        %313 = vmatprep.subr.mxu0 0.0
        %314 = vmatpush1.msra.mxu0 0.0
        %315 = vmatprep.subr.mxu0 0.0
        %316 = vmatpush1.msra.mxu0 0.0
        %317 = vmatprep.subr.mxu0 0.0
        %318 = vmatpush1.msra.mxu0 0.0
        %319 = vmatprep.subr.mxu0 0.0
        %320 = vmatpush1.msra.mxu0 0.0
        %321 = vmatprep.subr.mxu0 0.0
        %322 = vmatpush1.msra.mxu0 0.0
        %323 = vmatprep.subr.mxu0 0.0
        %324 = vmatpush1.msra.mxu0 0.0
        %325 = vmatprep.subr.mxu0 0.0
        %326 = vmatpush1.msra.mxu0 0.0
        %327 = vmatprep.subr.mxu0 0.0
        %328 = vmatpush1.msra.mxu0 0.0
        %329 = vmatprep.subr.mxu0 0.0
        %330 = vmatpush1.msra.mxu0 0.0
        %331 = vmatprep.subr.mxu0 0.0
        %332 = vmatpush1.msra.mxu0 0.0
        %333 = vmatprep.subr.mxu0 0.0
        %334 = vmatpush1.msra.mxu0 0.0
        %335 = vmatprep.subr.mxu0 0.0
        %336 = vmatpush1.msra.mxu0 0.0
        %337 = vmatprep.subr.mxu0 0.0
        %338 = vmatpush1.msra.mxu0 0.0
        %339 = vmatprep.subr.mxu0 0.0
        %340 = vmatpush1.msra.mxu0 0.0
        %341 = vmatprep.subr.mxu0 0.0
        %342 = vmatpush1.msra.mxu0 0.0
        %343 = vmatprep.mubr.f32.mxu0 0.0
        %344 = vmatmul.mubr.f32.gmra.mrb[0].mxu0 %v277
        %v345 = vpop.f32.mrb[0].mxu0
        %v346 = vadd.f32 %v274, %v345
        %v347 = vpop.f32.mrb[0].mxu0
        %348 = vdwg.mxu0
        %v349 = vlaneseq
        %v350 = vand.u32 %v349, 127
        %vm351 = vcmp.lt.s32.totalorder %v350, 4
        %vm352 = vcmp.eq.s32.totalorder %v350, 4
        %v353 = vsel %vm351, %v346, -1e+30
        %354 = vmax.xlane.f32.xlu0 %v353
        %v355 = vpop.xlane.xlu0 %354
        %v356 = vsub.f32 %v353, %v355
        %v357 = vmul.f32 %v356, 1.442695
        %v358 = vpow.pop %v357
        %359 = vadd.xlane.f32.xlu0 %v358
        %v360 = vpop.xlane.xlu0 %359
        %v361 = vrcp.pop %v360
        %v362 = vmul.f32 %v360, %v361
        %v363 = vsub.f32 2.0, %v362
        %v364 = vmul.f32 %v361, %v363
        %v365 = vmul.f32 %v358, %v364
        %v366 = vsel %vm352, %v346, %v365
        %367 = vst [vmem:[%s149] sm:$0xff] %v366
        %s368 = sand.u32 %s72, 1
        %s369 = scalar_lea.sflag [#allocation4], %s368
        %s370 = sand.u32 %s72, 1
        %s371 = smul.addr %s370, 8
        %s372 = scalar_lea.vmem [#allocation5], %s371
        // Predicated region
        $region33: #{tpu_custom_call.1} parent=27 // pred_check
          %p373 = pneg %p82
        $region34: #{tpu_custom_call.1} parent=27 // pred_check_branch
          %375 = sbr.rel (%p373) target = $region36
        $region35: #{tpu_custom_call.1} parent=27 // pred_region
          %s377 = ssub.s32 128, 128
          %378 = vsyncadd %s369, %s377
          %s379 = smul.addr %s17, 128
          %s380 = scalar_lea.hbm %s2, %s379
          %s382 = sshll.u32 %s372, 4
          %s383 = int_to_ptr.vmem [resolvable:$true] %s382
          %385 = dma.vmem_to_hbm [thread:$0]  %s383, 128, %s380, %s369
        $region36: #{tpu_custom_call.1} parent=27 // pred_fallthru
          _
      $region28: #{tpu_custom_call.1} parent=5 // pred_fallthru
        _
      %p386 = scmp.le.s32.totalorder 2, %s12
      // Predicated region
      $region37: #{tpu_custom_call.1} parent=5 // pred_check
        %p387 = pneg %p386
      $region38: #{tpu_custom_call.1} parent=5 // pred_check_branch
        %389 = sbr.rel (%p387) target = $region40
      $region39: #{tpu_custom_call.1} parent=5 // pred_region
        %s390 = ssub.s32 %s12, 2
        // Predicated region
        $region41: #{tpu_custom_call.1} parent=39 // pred_check
          %p391 = pneg %p88
        $region42: #{tpu_custom_call.1} parent=39 // pred_check_branch
          %393 = sbr.rel (%p391) target = $region44
        $region43: #{tpu_custom_call.1} parent=39 // pred_region
          %s394 = sand.u32 %s73, 1
          %s395 = scalar_lea.sflag [#allocation4], %s394
          %s396 = sand.u32 %s73, 1
          %s397 = smul.addr %s396, 8
          %s398 = scalar_lea.vmem [#allocation5], %s397
          %399 = dma.done %s395, 128
        $region44: #{tpu_custom_call.1} parent=39 // pred_fallthru
          _
      $region40: #{tpu_custom_call.1} parent=5 // pred_fallthru
        _
    $region6: #{tpu_custom_call.1} parent=1 // loop_footer
      %s16 = sadd.s32 1, %s12
    $region7: #{tpu_custom_call.1} parent=1 // loop_footer_branch
      %11 = sbr.rel target = $region3
    $region8: #{tpu_custom_call.1} parent=1 // loop_exit
      _
    %400 = vsyncpa [#allocation3], 1
    %s401 = scalar_lea.sflag [#allocation3], 1
    %402 = vsyncpa %s401, 1
    %403 = vsyncpa [#allocation4], 1
    %s404 = scalar_lea.sflag [#allocation4], 1
    %405 = vsyncpa %s404, 1

</llo_original>
